<compile_context>
chip_gen: v7x
topology: tpu7x:2x2x1
jax: 0.10.0
libtpu: 0.0.40
codegen_flags: <defaults>
</compile_context>

<pallas_src>
import functools

import jax
import jax.numpy as jnp
from jax.experimental import pallas as pl
from jax.experimental.pallas import tpu as pltpu

_LANE = 128
_SUBLANE = 8
# Budget for the kernel's pipelined VMEM buffers; leaves headroom for compiler
# temporaries even on v7x (64 MiB physical VMEM per TensorCore).
_VMEM_BUDGET_BYTES = 28 * 1024 * 1024
# Explicit scoped-VMEM limit: above v5e's 16 MiB default, below v7x's 64 MiB.
_VMEM_LIMIT_BYTES = 44 * 1024 * 1024


def _round_up(x: int, m: int) -> int:
    return ((x + m - 1) // m) * m


def _smog_kernel(x_ref, gt_ref, inv_g_ref, out_ref, *, inv_temperature: float):
    """MXU matmul on raw x / pre-transposed g + fused norm & temperature scale."""
    x = x_ref[...].astype(jnp.float32)                                   # (tm, dim)

    # torch.nn.functional.normalize clamps the norm at eps = 1e-12; clamping the
    # sum-of-squares at eps^2 = 1e-24 is equivalent.  Garbage rows of a partial
    # last block stay per-row (no cross-row leakage) and are never written back.
    inv_x = jax.lax.rsqrt(
        jnp.maximum(jnp.sum(x * x, axis=1, keepdims=True), jnp.float32(1e-24)))
    inv_x = inv_x * jnp.float32(inv_temperature)                         # (tm, 1)

    # g arrives pre-transposed and pre-cast from the wrapper -> plain
    # (tm, dim) @ (dim, n_pad) contraction, no per-step cast/relayout of the
    # resident operand.
    logits = jnp.dot(x.astype(gt_ref.dtype), gt_ref[...],
                     preferred_element_type=jnp.float32)                 # (tm, n_pad)

    # Fold both L2 normalizations and 1/temperature into broadcast vector
    # scales; never materialize a full (tm, n_pad) `scale` temporary.
    out_ref[...] = ((logits * inv_x) * inv_g_ref[...]).astype(out_ref.dtype)


def smog_prototypes_forward(x: jax.Array,
                            group_features: jax.Array,
                            temperature: float = 0.1,
                            *,
                            block_m: int = 512,
                            use_bf16_matmul: bool = True,
                            out_dtype=jnp.float32,
                            single_buffer_g: bool = True) -> jax.Array:
    """Pallas wrapper mirroring SMoGPrototypes.forward.

    `use_bf16_matmul=True` (default) runs the dot on the MXU in bf16 while the
    norms, output scale and accumulation stay f32 (~1e-3 relative error).
    `out_dtype=jnp.bfloat16` halves output HBM writeback if downstream allows.
    """
    bsz, dim = x.shape
    n_groups, dim_g = group_features.shape
    assert dim == dim_g, "x and group_features must share the feature dim"

    n_pad = _round_up(n_groups, _LANE)        # lane-dense output N
    mxu_dtype = jnp.bfloat16 if use_bf16_matmul else jnp.float32

    # ---- g-side work done exactly once, outside the batch-tile loop ----
    g32 = group_features.astype(jnp.float32)
    g_pad = g32 if n_pad == n_groups else jnp.pad(
        g32, ((0, n_pad - n_groups), (0, 0)))
    # rsqrt of the (clamped) squared norms, already laid out as a (1, n_pad) row.
    inv_g = jax.lax.rsqrt(
        jnp.maximum(jnp.sum(g_pad * g_pad, axis=1), jnp.float32(1e-24)))[None, :]
    g_t = g_pad.T.astype(mxu_dtype)           # (dim, n_pad), lane-dense along N

    # ---- batch tile sizing against the VMEM budget ----
    out_elem = jnp.dtype(out_dtype).itemsize
    g_elem = jnp.dtype(mxu_dtype).itemsize
    g_bufs = 1 if single_buffer_g else 2
    fixed = dim * n_pad * g_elem * g_bufs            # resident g
    fixed += 2 * _SUBLANE * n_pad * 4                # inv_g (2 bufs, sublane-padded)
    per_row = 2 * dim * 4                            # x tiles, double-buffered
    per_row += 2 * n_pad * out_elem                  # output tiles, double-buffered
    per_row += n_pad * 4                             # f32 logits temporary
    tile_cap = max(_SUBLANE,
                   ((_VMEM_BUDGET_BYTES - fixed) // per_row) // _SUBLANE * _SUBLANE)
    tile_m = max(_SUBLANE, min(block_m, _round_up(bsz, _SUBLANE), tile_cap))

    # Guarantee >= 2 grid steps whenever possible so both v7x TensorCores work.
    if pl.cdiv(bsz, tile_m) < 2 and tile_m > _SUBLANE:
        tile_m = max(_SUBLANE, _round_up(pl.cdiv(bsz, 2), _SUBLANE))
    num_tiles = pl.cdiv(bsz, tile_m)                 # partial last block is masked

    kernel = functools.partial(_smog_kernel,
                               inv_temperature=1.0 / float(temperature))

    def build(use_single_buffer_g: bool):
        g_spec_kwargs = (
            {"pipeline_mode": pl.Buffered(1)} if use_single_buffer_g else {})
        return pl.pallas_call(
            kernel,
            out_shape=jax.ShapeDtypeStruct((bsz, n_pad), out_dtype),
            grid=(num_tiles,),
            in_specs=[
                pl.BlockSpec((tile_m, dim), lambda i: (i, 0)),
                # Block index never changes -> stays resident across batch tiles.
                pl.BlockSpec((dim, n_pad), lambda i: (0, 0), **g_spec_kwargs),
                pl.BlockSpec((1, n_pad), lambda i: (0, 0)),
            ],
            out_specs=pl.BlockSpec((tile_m, n_pad), lambda i: (i, 0)),
            compiler_params=pltpu.CompilerParams(
                dimension_semantics=("parallel",),   # megacore-shardable on v7x
                vmem_limit_bytes=_VMEM_LIMIT_BYTES),
        )

    if single_buffer_g:
        try:
            out = build(True)(x, g_t, inv_g)
        except Exception:
            # Fallback for jax builds that reject Buffered(1): double-buffered g
            # is functionally identical, it only costs extra VMEM.
            out = build(False)(x, g_t, inv_g)
    else:
        out = build(False)(x, g_t, inv_g)

    # Padded group columns are exact zeros; slice them off only when needed.
    return out if n_pad == n_groups else out[:, :n_groups]


def _reference_forward(x, group_features, temperature=0.1):
    """Pure-JAX reference matching torch semantics (for the in-script check)."""
    eps = 1e-12
    xn = x / jnp.maximum(jnp.linalg.norm(x, axis=1, keepdims=True), eps)
    gn = group_features / jnp.maximum(
        jnp.linalg.norm(group_features, axis=1, keepdims=True), eps)
    return (xn @ gn.T) / temperature


if __name__ == "__main__":
    # Deterministic synthetic parameters / inputs.
    # SMoGPrototypes.__init__ stores `group_features` (n_groups, dim) and a beta
    # scalar; only `group_features` participates in forward().
    key = jax.random.PRNGKey(0)
    k1, k2, k3, k4 = jax.random.split(key, 4)
    beta = 0.99          # stored by the module but unused in forward()
    temperature = 0.1

    # Case 1: aligned shapes, f32 MXU path -> tight tolerance check.
    bsz, dim, n_groups = 8, 128, 16
    x = jax.random.normal(k1, (bsz, dim), dtype=jnp.float32)
    g = jax.random.normal(k2, (n_groups, dim), dtype=jnp.float32)
    logits = jax.block_until_ready(
        smog_prototypes_forward(x, g, temperature, use_bf16_matmul=False))
    ref = _reference_forward(x, g, temperature)
    assert logits.shape == (bsz, n_groups)
    assert jnp.allclose(logits, ref, atol=1e-4, rtol=1e-4), (
        "f32 Pallas output does not match reference")

    # Case 2: ragged shapes (partial batch tile + padded group dim), default
    # bf16 MXU path -> relaxed tolerance.
    bsz, dim, n_groups = 20, 96, 200
    x = jax.random.normal(k3, (bsz, dim), dtype=jnp.float32)
    g = jax.random.normal(k4, (n_groups, dim), dtype=jnp.float32)
    logits = jax.block_until_ready(smog_prototypes_forward(x, g, temperature))
    ref = _reference_forward(x, g, temperature)
    assert logits.shape == (bsz, n_groups)
    assert jnp.allclose(logits, ref, atol=5e-2, rtol=5e-2), (
        "bf16 Pallas output does not match reference")

    # TODO(synk): get_updated_group_features / set_group_features / assign_groups
    # are stateful momentum-update utilities outside forward(); not implemented.
    print("KERNEL_OK")
</pallas_src>

<mosaic_0001>
module attributes {stable_mosaic.version = 11 : i64} {
  func.func @_smog_kernel(%arg0: i32, %arg1: memref<8x128xf32, #tpu.memory_space<vmem>>, %arg2: memref<128x128xf32, #tpu.memory_space<vmem>>, %arg3: memref<1x128xf32, #tpu.memory_space<vmem>>, %arg4: memref<8x128xf32, #tpu.memory_space<vmem>>) attributes {dimension_semantics = [#tpu.dimension_semantics<parallel>], iteration_bounds = array<i64: 1>, scalar_prefetch = 0 : i64, scratch_operands = 0 : i64, tpu.core_type = #tpu.core_type<tc>, window_params = [{transform_indices = @transform_0, window_bounds = array<i64: 8, 128>}, {pipeline_mode = #tpu.pipeline_mode<synchronous>, transform_indices = @transform_1, window_bounds = array<i64: 128, 128>}, {pipeline_mode = #tpu.pipeline_mode<synchronous>, transform_indices = @transform_2, window_bounds = array<i64: 1, 128>}, {transform_indices = @transform_3, window_bounds = array<i64: 8, 128>}]} {
    %c0 = arith.constant 0 : index
    %c0_0 = arith.constant 0 : index
    %0 = vector.load %arg1[%c0, %c0_0] : memref<8x128xf32, #tpu.memory_space<vmem>>, vector<8x128xf32>
    %1 = arith.mulf %0, %0 : vector<8x128xf32>
    %cst = arith.constant dense<0.000000e+00> : vector<8xf32>
    %2 = vector.multi_reduction <add>, %1, %cst [1] : vector<8x128xf32> to vector<8xf32>
    %3 = vector.shape_cast %2 : vector<8xf32> to vector<8x1xf32>
    %cst_1 = arith.constant 1.000000e-24 : f32
    %4 = vector.broadcast %cst_1 : f32 to vector<8x1xf32>
    %5 = arith.maximumf %3, %4 : vector<8x1xf32>
    %6 = math.rsqrt %5 : vector<8x1xf32>
    %cst_2 = arith.constant 1.000000e+01 : f32
    %7 = vector.broadcast %cst_2 : f32 to vector<8x1xf32>
    %8 = arith.mulf %6, %7 : vector<8x1xf32>
    %c0_3 = arith.constant 0 : index
    %c0_4 = arith.constant 0 : index
    %9 = vector.load %arg2[%c0_3, %c0_4] : memref<128x128xf32, #tpu.memory_space<vmem>>, vector<128x128xf32>
    %cst_5 = arith.constant dense<0.000000e+00> : vector<8x128xf32>
    %10 = tpu.matmul %0, %9, %cst_5 {dimension_numbers = #tpu.dot_dimension_numbers<[1], [0], [0], [1], [0, 0, 1, 1], [], []>} : vector<8x128xf32>, vector<128x128xf32>, vector<8x128xf32> -> vector<8x128xf32>
    %11 = vector.broadcast %8 : vector<8x1xf32> to vector<8x128xf32>
    %12 = arith.mulf %10, %11 : vector<8x128xf32>
    %c0_6 = arith.constant 0 : index
    %c0_7 = arith.constant 0 : index
    %13 = vector.load %arg3[%c0_6, %c0_7] : memref<1x128xf32, #tpu.memory_space<vmem>>, vector<1x128xf32>
    %14 = vector.broadcast %13 : vector<1x128xf32> to vector<8x128xf32>
    %15 = arith.mulf %12, %14 : vector<8x128xf32>
    %c0_8 = arith.constant 0 : index
    %c0_9 = arith.constant 0 : index
    %16 = vector.load %arg4[%c0_8, %c0_9] : memref<8x128xf32, #tpu.memory_space<vmem>>, vector<8x128xf32>
    tpu.vector_store %arg4[%c0_8, %c0_9], %15 {strides = array<i32>} : memref<8x128xf32, #tpu.memory_space<vmem>>, vector<8x128xf32>,
    return
  }
  func.func @transform_0(%arg0: i32) -> (i32, i32) {
    %c0_i32 = arith.constant 0 : i32
    %c0_i32_0 = arith.constant 0 : i32
    return %arg0, %c0_i32 : i32, i32
  }
  func.func @transform_1(%arg0: i32) -> (i32, i32) {
    %c0_i32 = arith.constant 0 : i32
    %c0_i32_0 = arith.constant 0 : i32
    %c0_i32_1 = arith.constant 0 : i32
    return %c0_i32, %c0_i32_0 : i32, i32
  }
  func.func @transform_2(%arg0: i32) -> (i32, i32) {
    %c0_i32 = arith.constant 0 : i32
    %c0_i32_0 = arith.constant 0 : i32
    %c0_i32_1 = arith.constant 0 : i32
    return %c0_i32, %c0_i32_0 : i32, i32
  }
  func.func @transform_3(%arg0: i32) -> (i32, i32) {
    %c0_i32 = arith.constant 0 : i32
    %c0_i32_0 = arith.constant 0 : i32
    return %arg0, %c0_i32 : i32, i32
  }
}

module attributes {stable_mosaic.version = 11 : i64} {
  func.func @_smog_kernel(%arg0: i32, %arg1: memref<8x128xf32, #tpu.memory_space<vmem>>, %arg2: memref<128x128xf32, #tpu.memory_space<vmem>>, %arg3: memref<1x128xf32, #tpu.memory_space<vmem>>, %arg4: memref<8x128xf32, #tpu.memory_space<vmem>>) attributes {dimension_semantics = [#tpu.dimension_semantics<parallel>], iteration_bounds = array<i64: 1>, scalar_prefetch = 0 : i64, scratch_operands = 0 : i64, tpu.core_type = #tpu.core_type<tc>, window_params = [{transform_indices = @transform_0, window_bounds = array<i64: 8, 128>}, {pipeline_mode = #tpu.pipeline_mode<synchronous>, transform_indices = @transform_1, window_bounds = array<i64: 128, 128>}, {pipeline_mode = #tpu.pipeline_mode<synchronous>, transform_indices = @transform_2, window_bounds = array<i64: 1, 128>}, {transform_indices = @transform_3, window_bounds = array<i64: 8, 128>}]} {
    %c0 = arith.constant 0 : index
    %c0_0 = arith.constant 0 : index
    %0 = vector.load %arg1[%c0, %c0_0] : memref<8x128xf32, #tpu.memory_space<vmem>>, vector<8x128xf32>
    %1 = arith.mulf %0, %0 : vector<8x128xf32>
    %cst = arith.constant dense<0.000000e+00> : vector<8xf32>
    %2 = vector.multi_reduction <add>, %1, %cst [1] : vector<8x128xf32> to vector<8xf32>
    %3 = vector.shape_cast %2 : vector<8xf32> to vector<8x1xf32>
    %cst_1 = arith.constant 1.000000e-24 : f32
    %4 = vector.broadcast %cst_1 : f32 to vector<8x1xf32>
    %5 = arith.maximumf %3, %4 : vector<8x1xf32>
    %6 = math.rsqrt %5 : vector<8x1xf32>
    %cst_2 = arith.constant 1.000000e+01 : f32
    %7 = vector.broadcast %cst_2 : f32 to vector<8x1xf32>
    %8 = arith.mulf %6, %7 : vector<8x1xf32>
    %c0_3 = arith.constant 0 : index
    %c0_4 = arith.constant 0 : index
    %9 = vector.load %arg2[%c0_3, %c0_4] : memref<128x128xf32, #tpu.memory_space<vmem>>, vector<128x128xf32>
    %cst_5 = arith.constant dense<0.000000e+00> : vector<8x128xf32>
    %10 = tpu.matmul %0, %9, %cst_5 {dimension_numbers = #tpu.dot_dimension_numbers<[1], [0], [0], [1], [0, 0, 1, 1], [], []>} : vector<8x128xf32>, vector<128x128xf32>, vector<8x128xf32> -> vector<8x128xf32>
    %11 = vector.broadcast %8 : vector<8x1xf32> to vector<8x128xf32>
    %12 = arith.mulf %10, %11 : vector<8x128xf32>
    %c0_6 = arith.constant 0 : index
    %c0_7 = arith.constant 0 : index
    %13 = vector.load %arg3[%c0_6, %c0_7] : memref<1x128xf32, #tpu.memory_space<vmem>>, vector<1x128xf32>
    %14 = vector.broadcast %13 : vector<1x128xf32> to vector<8x128xf32>
    %15 = arith.mulf %12, %14 : vector<8x128xf32>
    %c0_8 = arith.constant 0 : index
    %c0_9 = arith.constant 0 : index
    %16 = vector.load %arg4[%c0_8, %c0_9] : memref<8x128xf32, #tpu.memory_space<vmem>>, vector<8x128xf32>
    tpu.vector_store %arg4[%c0_8, %c0_9], %15 {strides = array<i32>} : memref<8x128xf32, #tpu.memory_space<vmem>>, vector<8x128xf32>,
    return
  }
  func.func @transform_0(%arg0: i32) -> (i32, i32) {
    %c0_i32 = arith.constant 0 : i32
    %c0_i32_0 = arith.constant 0 : i32
    return %arg0, %c0_i32 : i32, i32
  }
  func.func @transform_1(%arg0: i32) -> (i32, i32) {
    %c0_i32 = arith.constant 0 : i32
    %c0_i32_0 = arith.constant 0 : i32
    %c0_i32_1 = arith.constant 0 : i32
    return %c0_i32, %c0_i32_0 : i32, i32
  }
  func.func @transform_2(%arg0: i32) -> (i32, i32) {
    %c0_i32 = arith.constant 0 : i32
    %c0_i32_0 = arith.constant 0 : i32
    %c0_i32_1 = arith.constant 0 : i32
    return %c0_i32, %c0_i32_0 : i32, i32
  }
  func.func @transform_3(%arg0: i32) -> (i32, i32) {
    %c0_i32 = arith.constant 0 : i32
    %c0_i32_0 = arith.constant 0 : i32
    return %arg0, %c0_i32 : i32, i32
  }
}

</mosaic_0001>

<llo_original>
// kernel: tpu_custom_call.1
$region0: #{tpu_custom_call.1}
  #allocation0 [shape = 'u32[]', space=smem, size = 0x4, offset = 0x4, fixed_abs, tag = 'smem constant byte address 0x4 - core index']
  #allocation1 [shape = 'u32[144,128]{1,0:T(1,128)}', space=vmem, size = 0x12000, scoped, tag = 'internal scratch']
  %s0 = inlined_call_operand.hbm [shape: f32[8,128], index: 0, kind: input, shape index: {}]
  %s1 = inlined_call_operand.hbm [shape: f32[128,128], index: 1, kind: input, shape index: {}]
  %s2 = inlined_call_operand.vmem [shape: f32[1,128], index: 2, kind: input, shape index: {}]
  %s3 = inlined_call_operand.hbm [shape: f32[8,128], index: 3, kind: output, shape index: {}]
  %s4 = sld [smem:[#allocation0]]
  $region30: #{tpu_custom_call.1} parent=0
    _
  %s6 = ssub.s32 1, %s4
  %s7 = scalar_select 0, %s6, %s4
  $region1: #{tpu_custom_call.1} parent=0
    #allocation2 [shape = 'u8[4096]{0}', space=vmem, size = 0x1000, scoped, tag = 'input window, operand 0, single buffered']
    #allocation3 [shape = 's32[1]{0}', space=sflag, size = 0x4, scoped, tag = 'scoped memory for tpu_custom_call.1']
    #allocation4 [shape = 's32[1]{0}', space=sflag, size = 0x4, scoped, tag = 'scoped memory for tpu_custom_call.1']
    #allocation5 [shape = 'u8[65536]{0}', space=vmem, size = 0x10000, scoped, tag = 'input window, operand 1, single buffered']
    #allocation6 [shape = 's32[1]{0}', space=sflag, size = 0x4, scoped, tag = 'scoped memory for tpu_custom_call.1']
    #allocation7 [shape = 'u8[4096]{0}', space=vmem, size = 0x1000, scoped, tag = 'output window, operand 0, single buffered']
    %8 = vsyncpa [#allocation3], 0
    %9 = vsyncpa [#allocation6], 0
    %10 = vsyncpa [#allocation4], 0
    // Predicated region
    $region2: #{tpu_custom_call.1} parent=1 // pred_check
      _
    $region3: #{tpu_custom_call.1} parent=1 // pred_check_branch
      %12 = sbr.rel (0) target = $region5
    $region4: #{tpu_custom_call.1} parent=1 // pred_region
      %s14 = ssub.s32 128, 128
      %15 = vsyncadd [#allocation3], %s14
      %s17 = sshll.u32 [#allocation2], 4
      %s18 = int_to_ptr.vmem [resolvable:$true] %s17
      %20 = dma.hbm_to_vmem [thread:$0]  %s0, 128, %s18, [#allocation3]
    $region5: #{tpu_custom_call.1} parent=1 // pred_fallthru
      _
    // Predicated region
    $region6: #{tpu_custom_call.1} parent=1 // pred_check
      _
    $region7: #{tpu_custom_call.1} parent=1 // pred_check_branch
      %22 = sbr.rel (0) target = $region9
    $region8: #{tpu_custom_call.1} parent=1 // pred_region
      %s24 = ssub.s32 2048, 2048
      %25 = vsyncadd [#allocation6], %s24
      %s26 = sshll.u32 [#allocation5], 4
      %s27 = int_to_ptr.vmem [resolvable:$true] %s26
      %32 = dma.hbm_to_vmem [thread:$0]  %s1, 2048, %s27, [#allocation6], 128, 128, 8
    $region9: #{tpu_custom_call.1} parent=1 // pred_fallthru
      _
    // Predicated region
    $region10: #{tpu_custom_call.1} parent=1 // pred_check
      _
    $region11: #{tpu_custom_call.1} parent=1 // pred_check_branch
      %34 = sbr.rel (0) target = $region13
    $region12: #{tpu_custom_call.1} parent=1 // pred_region
      _
    $region13: #{tpu_custom_call.1} parent=1 // pred_fallthru
      _
    // Predicated region
    $region14: #{tpu_custom_call.1} parent=1 // pred_check
      _
    $region15: #{tpu_custom_call.1} parent=1 // pred_check_branch
      %36 = sbr.rel (0) target = $region17
    $region16: #{tpu_custom_call.1} parent=1 // pred_region
      %37 = dma.done [#allocation3], 128
    $region17: #{tpu_custom_call.1} parent=1 // pred_fallthru
      _
    // Predicated region
    $region18: #{tpu_custom_call.1} parent=1 // pred_check
      _
    $region19: #{tpu_custom_call.1} parent=1 // pred_check_branch
      %39 = sbr.rel (0) target = $region21
    $region20: #{tpu_custom_call.1} parent=1 // pred_region
      %40 = dma.done [#allocation6], 2048
    $region21: #{tpu_custom_call.1} parent=1 // pred_fallthru
      _
    %v41 = vld [vmem:[#allocation2] sm:$0xff]
    %v42 = vmul.f32 %v41, %v41
    %43 = vadd.xlane.f32.xlu0 %v42
    %v44 = vpop.xlane.xlu0 %43
    %v45 = vmax.f32 %v44, 1e-24
    %v46 = vrsqrt.pop %v45
    %v47 = vmul.f32 %v46, 10.0
    %v48 = vld [vmem:[#allocation5] sm:$0xff]
    %v49 = vld [vmem:[#allocation5 + $0x8] sm:$0xff]
    %v50 = vld [vmem:[#allocation5 + $0x10] sm:$0xff]
    %v51 = vld [vmem:[#allocation5 + $0x18] sm:$0xff]
    %v52 = vld [vmem:[#allocation5 + $0x20] sm:$0xff]
    %v53 = vld [vmem:[#allocation5 + $0x28] sm:$0xff]
    %v54 = vld [vmem:[#allocation5 + $0x30] sm:$0xff]
    %v55 = vld [vmem:[#allocation5 + $0x38] sm:$0xff]
    %v56 = vld [vmem:[#allocation5 + $0x40] sm:$0xff]
    %v57 = vld [vmem:[#allocation5 + $0x48] sm:$0xff]
    %v58 = vld [vmem:[#allocation5 + $0x50] sm:$0xff]
    %v59 = vld [vmem:[#allocation5 + $0x58] sm:$0xff]
    %v60 = vld [vmem:[#allocation5 + $0x60] sm:$0xff]
    %v61 = vld [vmem:[#allocation5 + $0x68] sm:$0xff]
    %v62 = vld [vmem:[#allocation5 + $0x70] sm:$0xff]
    %v63 = vld [vmem:[#allocation5 + $0x78] sm:$0xff]
    %64 = vmatprep.subr.mxu0 0.0
    %65 = vmatpush1.msra.mxu0 %v48
    %66 = vmatprep.subr.mxu0 0.0
    %67 = vmatpush1.msra.mxu0 %v49
    %68 = vmatprep.subr.mxu0 0.0
    %69 = vmatpush1.msra.mxu0 %v50
    %70 = vmatprep.subr.mxu0 0.0
    %71 = vmatpush1.msra.mxu0 %v51
    %72 = vmatprep.subr.mxu0 0.0
    %73 = vmatpush1.msra.mxu0 %v52
    %74 = vmatprep.subr.mxu0 0.0
    %75 = vmatpush1.msra.mxu0 %v53
    %76 = vmatprep.subr.mxu0 0.0
    %77 = vmatpush1.msra.mxu0 %v54
    %78 = vmatprep.subr.mxu0 0.0
    %79 = vmatpush1.msra.mxu0 %v55
    %80 = vmatprep.subr.mxu0 0.0
    %81 = vmatpush1.msra.mxu0 %v56
    %82 = vmatprep.subr.mxu0 0.0
    %83 = vmatpush1.msra.mxu0 %v57
    %84 = vmatprep.subr.mxu0 0.0
    %85 = vmatpush1.msra.mxu0 %v58
    %86 = vmatprep.subr.mxu0 0.0
    %87 = vmatpush1.msra.mxu0 %v59
    %88 = vmatprep.subr.mxu0 0.0
    %89 = vmatpush1.msra.mxu0 %v60
    %90 = vmatprep.subr.mxu0 0.0
    %91 = vmatpush1.msra.mxu0 %v61
    %92 = vmatprep.subr.mxu0 0.0
    %93 = vmatpush1.msra.mxu0 %v62
    %94 = vmatprep.subr.mxu0 0.0
    %95 = vmatpush1.msra.mxu0 %v63
    %96 = vmatprep.subr.mxu0 0.0
    %97 = vmatpush1.msra.mxu0 0.0
    %98 = vmatprep.subr.mxu0 0.0
    %99 = vmatpush1.msra.mxu0 0.0
    %100 = vmatprep.subr.mxu0 0.0
    %101 = vmatpush1.msra.mxu0 0.0
    %102 = vmatprep.subr.mxu0 0.0
    %103 = vmatpush1.msra.mxu0 0.0
    %104 = vmatprep.subr.mxu0 0.0
    %105 = vmatpush1.msra.mxu0 0.0
    %106 = vmatprep.subr.mxu0 0.0
    %107 = vmatpush1.msra.mxu0 0.0
    %108 = vmatprep.subr.mxu0 0.0
    %109 = vmatpush1.msra.mxu0 0.0
    %110 = vmatprep.subr.mxu0 0.0
    %111 = vmatpush1.msra.mxu0 0.0
    %112 = vmatprep.subr.mxu0 0.0
    %113 = vmatpush1.msra.mxu0 0.0
    %114 = vmatprep.subr.mxu0 0.0
    %115 = vmatpush1.msra.mxu0 0.0
    %116 = vmatprep.subr.mxu0 0.0
    %117 = vmatpush1.msra.mxu0 0.0
    %118 = vmatprep.subr.mxu0 0.0
    %119 = vmatpush1.msra.mxu0 0.0
    %120 = vmatprep.subr.mxu0 0.0
    %121 = vmatpush1.msra.mxu0 0.0
    %122 = vmatprep.subr.mxu0 0.0
    %123 = vmatpush1.msra.mxu0 0.0
    %124 = vmatprep.subr.mxu0 0.0
    %125 = vmatpush1.msra.mxu0 0.0
    %126 = vmatprep.subr.mxu0 0.0
    %127 = vmatpush1.msra.mxu0 0.0
    %128 = vmatprep.mubr.f32.mxu0 0.0
    %129 = vmatmul.mubr.f32.gmra.mrb[0].mxu0 %v41
    %v130 = vpop.f32.mrb[0].mxu0
    %v131 = vadd.f32 0.0, %v130
    %v132 = vpop.f32.mrb[0].mxu0
    %133 = vdwg.mxu0
    %v134 = vmul.f32 %v131, %v47
    %v135 = vld [vmem:[%s2] sm:$0x1]
    %v137 = vlaneseq
    %v138 = vshrl.u32 %v137, 7
    %v139 = vsub.s32 0, %v138
    %v140 = vrot.slane %v135, %v139
    %v142 = vmul.f32 %v134, %v140
    %143 = vst [vmem:[#allocation7] sm:$0xff] %v142
    // Predicated region
    $region22: #{tpu_custom_call.1} parent=1 // pred_check
      _
    $region23: #{tpu_custom_call.1} parent=1 // pred_check_branch
      %145 = sbr.rel (0) target = $region25
    $region24: #{tpu_custom_call.1} parent=1 // pred_region
      %s147 = ssub.s32 128, 128
      %148 = vsyncadd [#allocation4], %s147
      %s150 = sshll.u32 [#allocation7], 4
      %s151 = int_to_ptr.vmem [resolvable:$true] %s150
      %153 = dma.vmem_to_hbm [thread:$0]  %s151, 128, %s3, [#allocation4]
    $region25: #{tpu_custom_call.1} parent=1 // pred_fallthru
      _
    // Predicated region
    $region26: #{tpu_custom_call.1} parent=1 // pred_check
      _
    $region27: #{tpu_custom_call.1} parent=1 // pred_check_branch
      %155 = sbr.rel (0) target = $region29
    $region28: #{tpu_custom_call.1} parent=1 // pred_region
      %156 = dma.done [#allocation4], 128
    $region29: #{tpu_custom_call.1} parent=1 // pred_fallthru
      _
    %157 = vsyncpa [#allocation3], 1
    %158 = vsyncpa [#allocation6], 1
    %159 = vsyncpa [#allocation4], 1

// kernel: tpu_custom_call.1
$region0: #{tpu_custom_call.1}
  #allocation0 [shape = 'u32[]', space=smem, size = 0x4, offset = 0x4, fixed_abs, tag = 'smem constant byte address 0x4 - core index']
  #allocation1 [shape = 'u32[144,128]{1,0:T(1,128)}', space=vmem, size = 0x12000, scoped, tag = 'internal scratch']
  %s0 = inlined_call_operand.hbm [shape: f32[8,128], index: 0, kind: input, shape index: {}]
  %s1 = inlined_call_operand.hbm [shape: f32[128,128], index: 1, kind: input, shape index: {}]
  %s2 = inlined_call_operand.vmem [shape: f32[1,128], index: 2, kind: input, shape index: {}]
  %s3 = inlined_call_operand.hbm [shape: f32[8,128], index: 3, kind: output, shape index: {}]
  %s4 = sld [smem:[#allocation0]]
  $region30: #{tpu_custom_call.1} parent=0
    _
  %s6 = ssub.s32 1, %s4
  %s7 = scalar_select 0, %s6, %s4
  $region1: #{tpu_custom_call.1} parent=0
    #allocation2 [shape = 'u8[4096]{0}', space=vmem, size = 0x1000, scoped, tag = 'input window, operand 0, single buffered']
    #allocation3 [shape = 's32[1]{0}', space=sflag, size = 0x4, scoped, tag = 'scoped memory for tpu_custom_call.1']
    #allocation4 [shape = 's32[1]{0}', space=sflag, size = 0x4, scoped, tag = 'scoped memory for tpu_custom_call.1']
    #allocation5 [shape = 'u8[65536]{0}', space=vmem, size = 0x10000, scoped, tag = 'input window, operand 1, single buffered']
    #allocation6 [shape = 's32[1]{0}', space=sflag, size = 0x4, scoped, tag = 'scoped memory for tpu_custom_call.1']
    #allocation7 [shape = 'u8[4096]{0}', space=vmem, size = 0x1000, scoped, tag = 'output window, operand 0, single buffered']
    %8 = vsyncpa [#allocation3], 0
    %9 = vsyncpa [#allocation6], 0
    %10 = vsyncpa [#allocation4], 0
    // Predicated region
    $region2: #{tpu_custom_call.1} parent=1 // pred_check
      _
    $region3: #{tpu_custom_call.1} parent=1 // pred_check_branch
      %12 = sbr.rel (0) target = $region5
    $region4: #{tpu_custom_call.1} parent=1 // pred_region
      %s14 = ssub.s32 128, 128
      %15 = vsyncadd [#allocation3], %s14
      %s17 = sshll.u32 [#allocation2], 4
      %s18 = int_to_ptr.vmem [resolvable:$true] %s17
      %20 = dma.hbm_to_vmem [thread:$0]  %s0, 128, %s18, [#allocation3]
    $region5: #{tpu_custom_call.1} parent=1 // pred_fallthru
      _
    // Predicated region
    $region6: #{tpu_custom_call.1} parent=1 // pred_check
      _
    $region7: #{tpu_custom_call.1} parent=1 // pred_check_branch
      %22 = sbr.rel (0) target = $region9
    $region8: #{tpu_custom_call.1} parent=1 // pred_region
      %s24 = ssub.s32 2048, 2048
      %25 = vsyncadd [#allocation6], %s24
      %s26 = sshll.u32 [#allocation5], 4
      %s27 = int_to_ptr.vmem [resolvable:$true] %s26
      %32 = dma.hbm_to_vmem [thread:$0]  %s1, 2048, %s27, [#allocation6], 128, 128, 8
    $region9: #{tpu_custom_call.1} parent=1 // pred_fallthru
      _
    // Predicated region
    $region10: #{tpu_custom_call.1} parent=1 // pred_check
      _
    $region11: #{tpu_custom_call.1} parent=1 // pred_check_branch
      %34 = sbr.rel (0) target = $region13
    $region12: #{tpu_custom_call.1} parent=1 // pred_region
      _
    $region13: #{tpu_custom_call.1} parent=1 // pred_fallthru
      _
    // Predicated region
    $region14: #{tpu_custom_call.1} parent=1 // pred_check
      _
    $region15: #{tpu_custom_call.1} parent=1 // pred_check_branch
      %36 = sbr.rel (0) target = $region17
    $region16: #{tpu_custom_call.1} parent=1 // pred_region
      %37 = dma.done [#allocation3], 128
    $region17: #{tpu_custom_call.1} parent=1 // pred_fallthru
      _
    // Predicated region
    $region18: #{tpu_custom_call.1} parent=1 // pred_check
      _
    $region19: #{tpu_custom_call.1} parent=1 // pred_check_branch
      %39 = sbr.rel (0) target = $region21
    $region20: #{tpu_custom_call.1} parent=1 // pred_region
      %40 = dma.done [#allocation6], 2048
    $region21: #{tpu_custom_call.1} parent=1 // pred_fallthru
      _
    %v41 = vld [vmem:[#allocation2] sm:$0xff]
    %v42 = vmul.f32 %v41, %v41
    %43 = vadd.xlane.f32.xlu0 %v42
    %v44 = vpop.xlane.xlu0 %43
    %v45 = vmax.f32 %v44, 1e-24
    %v46 = vrsqrt.pop %v45
    %v47 = vmul.f32 %v46, 10.0
    %v48 = vld [vmem:[#allocation5] sm:$0xff]
    %v49 = vld [vmem:[#allocation5 + $0x8] sm:$0xff]
    %v50 = vld [vmem:[#allocation5 + $0x10] sm:$0xff]
    %v51 = vld [vmem:[#allocation5 + $0x18] sm:$0xff]
    %v52 = vld [vmem:[#allocation5 + $0x20] sm:$0xff]
    %v53 = vld [vmem:[#allocation5 + $0x28] sm:$0xff]
    %v54 = vld [vmem:[#allocation5 + $0x30] sm:$0xff]
    %v55 = vld [vmem:[#allocation5 + $0x38] sm:$0xff]
    %v56 = vld [vmem:[#allocation5 + $0x40] sm:$0xff]
    %v57 = vld [vmem:[#allocation5 + $0x48] sm:$0xff]
    %v58 = vld [vmem:[#allocation5 + $0x50] sm:$0xff]
    %v59 = vld [vmem:[#allocation5 + $0x58] sm:$0xff]
    %v60 = vld [vmem:[#allocation5 + $0x60] sm:$0xff]
    %v61 = vld [vmem:[#allocation5 + $0x68] sm:$0xff]
    %v62 = vld [vmem:[#allocation5 + $0x70] sm:$0xff]
    %v63 = vld [vmem:[#allocation5 + $0x78] sm:$0xff]
    %64 = vmatprep.subr.mxu0 0.0
    %65 = vmatpush1.msra.mxu0 %v48
    %66 = vmatprep.subr.mxu0 0.0
    %67 = vmatpush1.msra.mxu0 %v49
    %68 = vmatprep.subr.mxu0 0.0
    %69 = vmatpush1.msra.mxu0 %v50
    %70 = vmatprep.subr.mxu0 0.0
    %71 = vmatpush1.msra.mxu0 %v51
    %72 = vmatprep.subr.mxu0 0.0
    %73 = vmatpush1.msra.mxu0 %v52
    %74 = vmatprep.subr.mxu0 0.0
    %75 = vmatpush1.msra.mxu0 %v53
    %76 = vmatprep.subr.mxu0 0.0
    %77 = vmatpush1.msra.mxu0 %v54
    %78 = vmatprep.subr.mxu0 0.0
    %79 = vmatpush1.msra.mxu0 %v55
    %80 = vmatprep.subr.mxu0 0.0
    %81 = vmatpush1.msra.mxu0 %v56
    %82 = vmatprep.subr.mxu0 0.0
    %83 = vmatpush1.msra.mxu0 %v57
    %84 = vmatprep.subr.mxu0 0.0
    %85 = vmatpush1.msra.mxu0 %v58
    %86 = vmatprep.subr.mxu0 0.0
    %87 = vmatpush1.msra.mxu0 %v59
    %88 = vmatprep.subr.mxu0 0.0
    %89 = vmatpush1.msra.mxu0 %v60
    %90 = vmatprep.subr.mxu0 0.0
    %91 = vmatpush1.msra.mxu0 %v61
    %92 = vmatprep.subr.mxu0 0.0
    %93 = vmatpush1.msra.mxu0 %v62
    %94 = vmatprep.subr.mxu0 0.0
    %95 = vmatpush1.msra.mxu0 %v63
    %96 = vmatprep.subr.mxu0 0.0
    %97 = vmatpush1.msra.mxu0 0.0
    %98 = vmatprep.subr.mxu0 0.0
    %99 = vmatpush1.msra.mxu0 0.0
    %100 = vmatprep.subr.mxu0 0.0
    %101 = vmatpush1.msra.mxu0 0.0
    %102 = vmatprep.subr.mxu0 0.0
    %103 = vmatpush1.msra.mxu0 0.0
    %104 = vmatprep.subr.mxu0 0.0
    %105 = vmatpush1.msra.mxu0 0.0
    %106 = vmatprep.subr.mxu0 0.0
    %107 = vmatpush1.msra.mxu0 0.0
    %108 = vmatprep.subr.mxu0 0.0
    %109 = vmatpush1.msra.mxu0 0.0
    %110 = vmatprep.subr.mxu0 0.0
    %111 = vmatpush1.msra.mxu0 0.0
    %112 = vmatprep.subr.mxu0 0.0
    %113 = vmatpush1.msra.mxu0 0.0
    %114 = vmatprep.subr.mxu0 0.0
    %115 = vmatpush1.msra.mxu0 0.0
    %116 = vmatprep.subr.mxu0 0.0
    %117 = vmatpush1.msra.mxu0 0.0
    %118 = vmatprep.subr.mxu0 0.0
    %119 = vmatpush1.msra.mxu0 0.0
    %120 = vmatprep.subr.mxu0 0.0
    %121 = vmatpush1.msra.mxu0 0.0
    %122 = vmatprep.subr.mxu0 0.0
    %123 = vmatpush1.msra.mxu0 0.0
    %124 = vmatprep.subr.mxu0 0.0
    %125 = vmatpush1.msra.mxu0 0.0
    %126 = vmatprep.subr.mxu0 0.0
    %127 = vmatpush1.msra.mxu0 0.0
    %128 = vmatprep.mubr.f32.mxu0 0.0
    %129 = vmatmul.mubr.f32.gmra.mrb[0].mxu0 %v41
    %v130 = vpop.f32.mrb[0].mxu0
    %v131 = vadd.f32 0.0, %v130
    %v132 = vpop.f32.mrb[0].mxu0
    %133 = vdwg.mxu0
    %v134 = vmul.f32 %v131, %v47
    %v135 = vld [vmem:[%s2] sm:$0x1]
    %v137 = vlaneseq
    %v138 = vshrl.u32 %v137, 7
    %v139 = vsub.s32 0, %v138
    %v140 = vrot.slane %v135, %v139
    %v142 = vmul.f32 %v134, %v140
    %143 = vst [vmem:[#allocation7] sm:$0xff] %v142
    // Predicated region
    $region22: #{tpu_custom_call.1} parent=1 // pred_check
      _
    $region23: #{tpu_custom_call.1} parent=1 // pred_check_branch
      %145 = sbr.rel (0) target = $region25
    $region24: #{tpu_custom_call.1} parent=1 // pred_region
      %s147 = ssub.s32 128, 128
      %148 = vsyncadd [#allocation4], %s147
      %s150 = sshll.u32 [#allocation7], 4
      %s151 = int_to_ptr.vmem [resolvable:$true] %s150
      %153 = dma.vmem_to_hbm [thread:$0]  %s151, 128, %s3, [#allocation4]
    $region25: #{tpu_custom_call.1} parent=1 // pred_fallthru
      _
    // Predicated region
    $region26: #{tpu_custom_call.1} parent=1 // pred_check
      _
    $region27: #{tpu_custom_call.1} parent=1 // pred_check_branch
      %155 = sbr.rel (0) target = $region29
    $region28: #{tpu_custom_call.1} parent=1 // pred_region
      %156 = dma.done [#allocation4], 128
    $region29: #{tpu_custom_call.1} parent=1 // pred_fallthru
      _
    %157 = vsyncpa [#allocation3], 1
    %158 = vsyncpa [#allocation6], 1
    %159 = vsyncpa [#allocation4], 1

</llo_original>
